<compile_context>
chip_gen: v7x
topology: tpu7x:2x2x1
jax: 0.10.0
libtpu: 0.0.40
codegen_flags: <defaults>
</compile_context>

<pallas_src>
import functools
import math

import jax
import jax.numpy as jnp
from jax import lax
from jax.experimental import pallas as pl
from jax.experimental.pallas import tpu as pltpu


def _round_up(x, m):
    return (x + m - 1) // m * m


def _choose_tile_m(n_pixels, n_gt_pad, tile_m):
    """Pick a lane-dense (multiple of 128) pixel tile from a live-VMEM budget."""
    if tile_m is not None:
        return max(128, _round_up(int(tile_m), 128))
    # Live working set per grid step (conservative, generation-safe for v7x):
    #   double-buffered streaming inputs: 2 * (8 + 4) = 24 B / pixel
    #   ~6 live (n_gt_pad, tile_m) f32 temps (dist, w, logits, e, w*e, diff^2)
    budget = 20 * 1024 * 1024
    bytes_per_pixel = 24 + 24 * n_gt_pad
    cap = (budget // bytes_per_pixel) // 128 * 128
    cap = int(min(max(cap, 128), 65536))
    m_pad = _round_up(n_pixels, 128)
    if m_pad <= cap:
        return m_pad                      # single tile (pad only to lane alignment)
    if n_pixels % 128 == 0:
        # Prefer a multiple-of-128 tile dividing n_pixels exactly -> no pad path.
        cand = cap
        lo = max(4096, cap - 16384)
        while cand >= lo:
            if n_pixels % cand == 0:
                return cand
            cand -= 128
    return cap


def _whd_kernel(cnt_ref, norm_ref, pix_ref, prob_ref, gt_ref, t1_ref, t2_ref,
                rmax_ref, rden_ref, rnum_ref, t1num_ref, psum_ref,
                *, max_dist, alpha_abs, n_pixels, tile_m, mask_pixels):
    # cnt_ref : SMEM (B,)            int32, true GT count per batch (scalar prefetch)
    # norm_ref: SMEM (2B,)           float32, per-batch (y, x) norm factors (prefetch)
    # pix_ref : VMEM (1, 2, TILE_M)  shared UNnormalized pixel coords (y; x) tile
    # prob_ref: VMEM (1, 1, TILE_M)  probability-map tile
    # gt_ref  : VMEM (1, NGT_PAD, 2) normalized GT points (padded by repetition)
    # t1_ref/t2_ref: (1, 1, 1) per-batch outputs (written on last tile only)
    b = pl.program_id(0)
    m = pl.program_id(1)
    last = pl.num_programs(1) - 1

    @pl.when(m == 0)
    def _init():
        rmax_ref[...] = jnp.full_like(rmax_ref, -jnp.inf)
        rden_ref[...] = jnp.zeros_like(rden_ref)
        rnum_ref[...] = jnp.zeros_like(rnum_ref)
        t1num_ref[...] = jnp.zeros_like(t1num_ref)
        psum_ref[...] = jnp.zeros_like(psum_ref)

    pix = pix_ref[0]        # (2, TILE_M)   unnormalized
    prob = prob_ref[0]      # (1, TILE_M)
    gt = gt_ref[0]          # (NGT_PAD, 2)  normalized

    ny = norm_ref[2 * b]        # per-batch y norm factor (scalar, SMEM)
    nx = norm_ref[2 * b + 1]    # per-batch x norm factor (scalar, SMEM)

    # Pairwise Euclidean distances: GT rows on sublanes, pixels on lanes.
    diff0 = gt[:, 0:1] - ny * pix[0:1, :]          # (NGT_PAD, TILE_M)
    acc = diff0 * diff0
    diff1 = gt[:, 1:2] - nx * pix[1:2, :]
    acc = acc + diff1 * diff1
    dist = jnp.sqrt(acc)                           # (NGT_PAD, TILE_M)

    # ---- term 1: p-weighted min over GT points ------------------------------
    # Padded pixels have p == 0, so no pixel mask is needed here.
    colmin = jnp.min(dist, axis=0, keepdims=True)                    # (1, TILE_M)
    t1num_ref[...] += jnp.sum(prob * colmin, axis=1, keepdims=True)  # (1, 1)
    psum_ref[...] += jnp.sum(prob, axis=1, keepdims=True)            # (1, 1)

    # ---- term 2: generalized mean (online softmax over the pixel axis) ------
    def accumulate_term2(apply_mask):
        w = max_dist + prob * (dist - max_dist)                      # (NGT_PAD, TILE_M)
        logits = (-alpha_abs) * w
        tile_max = jnp.max(logits, axis=1, keepdims=True)            # (NGT_PAD, 1)
        new_max = jnp.maximum(rmax_ref[...], tile_max)
        e = jnp.exp(logits - new_max)                                # (NGT_PAD, TILE_M)
        if apply_mask:
            col = lax.broadcasted_iota(jnp.int32, (1, tile_m), 1) + m * tile_m
            e = jnp.where(col < n_pixels, e, 0.0)
        scale = jnp.exp(rmax_ref[...] - new_max)
        rden_ref[...] = scale * rden_ref[...] + jnp.sum(e, axis=1, keepdims=True)
        rnum_ref[...] = scale * rnum_ref[...] + jnp.sum(w * e, axis=1, keepdims=True)
        rmax_ref[...] = new_max

    if mask_pixels:
        # Only the last pixel tile contains padded columns: keep the
        # iota+compare+select off the hot path of every other tile.
        @pl.when(m == last)
        def _masked():
            accumulate_term2(True)

        @pl.when(m != last)
        def _unmasked():
            accumulate_term2(False)
    else:
        accumulate_term2(False)

    @pl.when(m == last)
    def _finalize():
        n_gt = cnt_ref[b]
        minn = rnum_ref[...] / rden_ref[...]                         # (NGT_PAD, 1)
        row_ids = lax.broadcasted_iota(jnp.int32, minn.shape, 0)
        minn = jnp.where(row_ids < n_gt, minn, 0.0)                  # drop padded rows
        term2 = jnp.sum(minn, axis=0, keepdims=True) / n_gt.astype(jnp.float32)
        term1 = t1num_ref[...] / (psum_ref[...] + 1e-6)
        t1_ref[...] = term1.reshape(1, 1, 1)
        t2_ref[...] = term2.reshape(1, 1, 1)


def weighted_hausdorff_distance(prob_map, gt_list, orig_sizes, *, alpha=-4.0,
                                tile_m=None, return_2_terms=False):
    """Weighted Hausdorff Distance (batch-averaged), matching the PyTorch module.

    prob_map:  (B, H, W) float, values in [0, 1].
    gt_list:   list of B arrays, each (n_gt_b, 2) of (row, col) GT points.
    orig_sizes:(B, 2) original (height, width) of each image.
    alpha:     generalized-mean exponent (module uses the nn.Parameter -4.0).
    """
    assert prob_map.ndim == 3, "The probability map must be (B x H x W)"
    B, H, W = prob_map.shape
    assert len(gt_list) == B
    assert orig_sizes.shape == (B, 2)

    n_pixels = H * W
    max_dist = math.sqrt(H * H + W * W)
    resized = jnp.array([H, W], jnp.float32)

    # --- GT padding (sublane axis, bucketed to powers of two >= 8,
    #     padded by repeating the last real point: duplicates cannot change a min)
    n_gt_list = [int(g.shape[0]) for g in gt_list]
    # TODO(synk): per-batch empty-GT early exit (term1=0, term2=max_dist) not in-kernel.
    assert all(n > 0 for n in n_gt_list), "empty ground-truth sets not supported"
    max_ngt = max(n_gt_list)
    n_gt_pad = max(8, 1 << (max_ngt - 1).bit_length())
    gt_padded = []
    for g in gt_list:
        g = jnp.asarray(g, jnp.float32)
        pad_rows = n_gt_pad - g.shape[0]
        if pad_rows:
            g = jnp.concatenate([g, jnp.tile(g[-1:], (pad_rows, 1))], axis=0)
        gt_padded.append(g)
    gt_padded = jnp.stack(gt_padded, axis=0)                  # (B, NGT_PAD, 2)
    counts = jnp.array(n_gt_list, jnp.int32)                  # (B,)

    # --- per-batch norm factors (SMEM prefetch) + normalized GT points
    norm = orig_sizes.astype(jnp.float32) / resized[None, :]  # (B, 2)
    gt_norm = norm[:, None, :] * gt_padded                    # (B, NGT_PAD, 2)
    norm_flat = norm.reshape(-1)                              # (2B,) -> SMEM

    # --- shared UNnormalized pixel grid, lane-dense (1, 2, M) layout
    rows = jnp.arange(H, dtype=jnp.float32)
    cols = jnp.arange(W, dtype=jnp.float32)
    grid_yx = jnp.stack([jnp.repeat(rows, W), jnp.tile(cols, H)], axis=0)[None]  # (1,2,M)
    prob_flat = prob_map.astype(jnp.float32).reshape(B, 1, n_pixels)             # (B,1,M)

    # --- pixel-axis tiling
    tile_m = _choose_tile_m(n_pixels, n_gt_pad, tile_m)
    n_pixels_pad = _round_up(n_pixels, tile_m)
    pad_m = n_pixels_pad - n_pixels
    if pad_m:
        grid_yx = jnp.pad(grid_yx, ((0, 0), (0, 0), (0, pad_m)))
        prob_flat = jnp.pad(prob_flat, ((0, 0), (0, 0), (0, pad_m)))
    n_tiles = n_pixels_pad // tile_m

    kernel = functools.partial(
        _whd_kernel,
        max_dist=float(max_dist),
        alpha_abs=abs(float(alpha)),
        n_pixels=n_pixels,
        tile_m=tile_m,
        mask_pixels=(pad_m != 0),
    )

    # Raise scoped VMEM (v5e default is only ~16 MiB) but stay well under v7x's
    # 64 MiB physical VMEM.
    est_live = tile_m * (24 + 24 * n_gt_pad)
    vmem_limit = int(min(60 * 1024 * 1024, max(32 * 1024 * 1024, 2 * est_live)))

    grid_spec = pltpu.PrefetchScalarGridSpec(
        num_scalar_prefetch=2,                        # counts, norm factors -> SMEM
        grid=(B, n_tiles),
        in_specs=[
            pl.BlockSpec((1, 2, tile_m), lambda b, m, cnt, nrm: (0, 0, m)),   # shared grid
            pl.BlockSpec((1, 1, tile_m), lambda b, m, cnt, nrm: (b, 0, m)),   # prob map
            pl.BlockSpec((1, n_gt_pad, 2), lambda b, m, cnt, nrm: (b, 0, 0)),  # GT points
        ],
        out_specs=[
            pl.BlockSpec((1, 1, 1), lambda b, m, cnt, nrm: (b, 0, 0)),
            pl.BlockSpec((1, 1, 1), lambda b, m, cnt, nrm: (b, 0, 0)),
        ],
        scratch_shapes=[
            pltpu.VMEM((n_gt_pad, 1), jnp.float32),  # running max   (term 2)
            pltpu.VMEM((n_gt_pad, 1), jnp.float32),  # running denom (term 2)
            pltpu.VMEM((n_gt_pad, 1), jnp.float32),  # running numer (term 2)
            pltpu.VMEM((1, 1), jnp.float32),         # sum p * min_gt d (term 1)
            pltpu.VMEM((1, 1), jnp.float32),         # sum p            (term 1)
        ],
    )

    t1, t2 = pl.pallas_call(
        kernel,
        out_shape=(jax.ShapeDtypeStruct((B, 1, 1), jnp.float32),
                   jax.ShapeDtypeStruct((B, 1, 1), jnp.float32)),
        grid_spec=grid_spec,
        compiler_params=pltpu.CompilerParams(
            dimension_semantics=("parallel", "arbitrary"),
            vmem_limit_bytes=vmem_limit),
    )(counts, norm_flat, grid_yx, prob_flat, gt_norm)

    t1 = t1.reshape(B)
    t2 = t2.reshape(B)
    if return_2_terms:
        return t1.mean(), t2.mean()
    return t1.mean() + t2.mean()


def _reference_whd(prob_map, gt_list, orig_sizes, height, width, alpha=-4.0):
    """Pure-JAX mirror of the PyTorch WeightedHausdorffDistance.forward."""
    B = prob_map.shape[0]
    resized = jnp.array([height, width], jnp.float32)
    max_dist = math.sqrt(height ** 2 + width ** 2)
    ys, xs = jnp.meshgrid(jnp.arange(height, dtype=jnp.float32),
                          jnp.arange(width, dtype=jnp.float32), indexing="ij")
    all_locs = jnp.stack([ys.reshape(-1), xs.reshape(-1)], axis=1)   # (M, 2)
    t1s, t2s = [], []
    for b in range(B):
        p = prob_map[b].reshape(-1).astype(jnp.float32)
        gt_b = jnp.asarray(gt_list[b], jnp.float32)
        nf = (orig_sizes[b].astype(jnp.float32) / resized)[None, :]
        nx = nf * all_locs
        ny = nf * gt_b
        diff = nx[:, None, :] - ny[None, :, :]
        d = jnp.sqrt(jnp.sum(diff ** 2, axis=-1))                    # (M, n_gt)
        n_est = p.sum()
        t1 = jnp.sum(p * jnp.min(d, axis=1)) / (n_est + 1e-6)
        p_rep = p[:, None]
        w = (1.0 - p_rep) * max_dist + p_rep * d
        sm = jax.nn.softmax(-w * abs(alpha), axis=0)
        minn = jnp.sum(w * sm, axis=0)
        t2 = jnp.mean(minn)
        t1s.append(t1)
        t2s.append(t2)
    return jnp.mean(jnp.stack(t1s)) + jnp.mean(jnp.stack(t2s))


if __name__ == "__main__":
    H, W, B = 16, 16, 2                 # n_pixels = 256
    key = jax.random.PRNGKey(0)
    k_prob, k_gt0, k_gt1, k_prob2, k_gt2, k_gt3 = jax.random.split(key, 6)

    prob_map = jax.random.uniform(k_prob, (B, H, W), dtype=jnp.float32)
    scale = jnp.array([H - 1, W - 1], jnp.float32)
    gt_list = [
        jax.random.uniform(k_gt0, (5, 2), dtype=jnp.float32) * scale,   # 5 GT points
        jax.random.uniform(k_gt1, (8, 2), dtype=jnp.float32) * scale,   # 8 GT points
    ]
    orig_sizes = jnp.array([[32.0, 32.0], [24.0, 40.0]], dtype=jnp.float32)

    # tile_m=128 -> 2 pixel tiles per batch, exercising the online-softmax carry.
    res = weighted_hausdorff_distance(prob_map, gt_list, orig_sizes, tile_m=128)
    jax.block_until_ready(res)
    ref = _reference_whd(prob_map, gt_list, orig_sizes, H, W)
    assert jnp.allclose(res, ref, rtol=1e-4, atol=1e-4), (res, ref)

    # Default tile heuristic + pixel count not a multiple of 128: exercises the
    # pl.when-gated pad-mask path on the (single, last) tile.
    H2, W2 = 13, 11                     # n_pixels = 143 -> padded to 256
    prob_map2 = jax.random.uniform(k_prob2, (B, H2, W2), dtype=jnp.float32)
    scale2 = jnp.array([H2 - 1, W2 - 1], jnp.float32)
    gt_list2 = [
        jax.random.uniform(k_gt2, (3, 2), dtype=jnp.float32) * scale2,
        jax.random.uniform(k_gt3, (6, 2), dtype=jnp.float32) * scale2,
    ]
    orig_sizes2 = jnp.array([[26.0, 22.0], [13.0, 11.0]], dtype=jnp.float32)
    res2 = weighted_hausdorff_distance(prob_map2, gt_list2, orig_sizes2)
    jax.block_until_ready(res2)
    ref2 = _reference_whd(prob_map2, gt_list2, orig_sizes2, H2, W2)
    assert jnp.allclose(res2, ref2, rtol=1e-4, atol=1e-4), (res2, ref2)

    print("KERNEL_OK")
</pallas_src>

<mosaic_0001>
module attributes {stable_mosaic.version = 11 : i64} {
  func.func @_whd_kernel(%arg0: i32, %arg1: i32, %arg2: memref<2xi32, #tpu.memory_space<smem>>, %arg3: memref<4xf32, #tpu.memory_space<smem>>, %arg4: memref<1x2x128xf32, #tpu.memory_space<vmem>>, %arg5: memref<1x1x128xf32, #tpu.memory_space<vmem>>, %arg6: memref<1x8x2xf32, #tpu.memory_space<vmem>>, %arg7: memref<1x1x1xf32, #tpu.memory_space<vmem>>, %arg8: memref<1x1x1xf32, #tpu.memory_space<vmem>>, %arg9: memref<8x1xf32, #tpu.memory_space<vmem>>, %arg10: memref<8x1xf32, #tpu.memory_space<vmem>>, %arg11: memref<8x1xf32, #tpu.memory_space<vmem>>, %arg12: memref<1x1xf32, #tpu.memory_space<vmem>>, %arg13: memref<1x1xf32, #tpu.memory_space<vmem>>) attributes {dimension_semantics = [#tpu.dimension_semantics<parallel>, #tpu.dimension_semantics<arbitrary>], iteration_bounds = array<i64: 2, 2>, scalar_prefetch = 2 : i64, scratch_operands = 5 : i64, tpu.core_type = #tpu.core_type<tc>, window_params = [{transform_indices = @transform_0, window_bounds = array<i64: 1, 2, 128>}, {transform_indices = @transform_1, window_bounds = array<i64: 1, 1, 128>}, {transform_indices = @transform_2, window_bounds = array<i64: 1, 8, 2>}, {transform_indices = @transform_3, window_bounds = array<i64: 1, 1, 1>}, {transform_indices = @transform_4, window_bounds = array<i64: 1, 1, 1>}]} {
    %c0_i32 = arith.constant 0 : i32
    %0 = arith.cmpi eq, %arg1, %c0_i32 : i32
    %1 = arith.extui %0 : i1 to i32
    %c0_i32_0 = arith.constant 0 : i32
    %2 = arith.cmpi ne, %1, %c0_i32_0 : i32
    scf.if %2 {
      %cst_42 = arith.constant 0xFF800000 : f32
      %82 = vector.broadcast %cst_42 : f32 to vector<8x1xf32>
      %c0_43 = arith.constant 0 : index
      %c0_44 = arith.constant 0 : index
      %83 = vector.load %arg9[%c0_43, %c0_44] : memref<8x1xf32, #tpu.memory_space<vmem>>, vector<8x1xf32>
      tpu.vector_store %arg9[%c0_43, %c0_44], %82 {strides = array<i32>} : memref<8x1xf32, #tpu.memory_space<vmem>>, vector<8x1xf32>,
      %cst_45 = arith.constant 0.000000e+00 : f32
      %84 = vector.broadcast %cst_45 : f32 to vector<8x1xf32>
      %c0_46 = arith.constant 0 : index
      %c0_47 = arith.constant 0 : index
      %85 = vector.load %arg10[%c0_46, %c0_47] : memref<8x1xf32, #tpu.memory_space<vmem>>, vector<8x1xf32>
      tpu.vector_store %arg10[%c0_46, %c0_47], %84 {strides = array<i32>} : memref<8x1xf32, #tpu.memory_space<vmem>>, vector<8x1xf32>,
      %cst_48 = arith.constant 0.000000e+00 : f32
      %86 = vector.broadcast %cst_48 : f32 to vector<8x1xf32>
      %c0_49 = arith.constant 0 : index
      %c0_50 = arith.constant 0 : index
      %87 = vector.load %arg11[%c0_49, %c0_50] : memref<8x1xf32, #tpu.memory_space<vmem>>, vector<8x1xf32>
      tpu.vector_store %arg11[%c0_49, %c0_50], %86 {strides = array<i32>} : memref<8x1xf32, #tpu.memory_space<vmem>>, vector<8x1xf32>,
      %cst_51 = arith.constant 0.000000e+00 : f32
      %88 = vector.broadcast %cst_51 : f32 to vector<1x1xf32>
      %c0_52 = arith.constant 0 : index
      %c0_53 = arith.constant 0 : index
      %89 = vector.load %arg12[%c0_52, %c0_53] : memref<1x1xf32, #tpu.memory_space<vmem>>, vector<1x1xf32>
      tpu.vector_store %arg12[%c0_52, %c0_53], %88 {strides = array<i32>} : memref<1x1xf32, #tpu.memory_space<vmem>>, vector<1x1xf32>,
      %cst_54 = arith.constant 0.000000e+00 : f32
      %90 = vector.broadcast %cst_54 : f32 to vector<1x1xf32>
      %c0_55 = arith.constant 0 : index
      %c0_56 = arith.constant 0 : index
      %91 = vector.load %arg13[%c0_55, %c0_56] : memref<1x1xf32, #tpu.memory_space<vmem>>, vector<1x1xf32>
      tpu.vector_store %arg13[%c0_55, %c0_56], %90 {strides = array<i32>} : memref<1x1xf32, #tpu.memory_space<vmem>>, vector<1x1xf32>,
    } else {
    }
    %c0 = arith.constant 0 : index
    %c0_1 = arith.constant 0 : index
    %c0_2 = arith.constant 0 : index
    %3 = vector.load %arg4[%c0, %c0_1, %c0_2] : memref<1x2x128xf32, #tpu.memory_space<vmem>>, vector<1x2x128xf32>
    %4 = vector.shape_cast %3 : vector<1x2x128xf32> to vector<2x128xf32>
    %c0_3 = arith.constant 0 : index
    %c0_4 = arith.constant 0 : index
    %c0_5 = arith.constant 0 : index
    %5 = vector.load %arg5[%c0_3, %c0_4, %c0_5] : memref<1x1x128xf32, #tpu.memory_space<vmem>>, vector<1x1x128xf32>
    %6 = vector.shape_cast %5 : vector<1x1x128xf32> to vector<1x128xf32>
    %c0_6 = arith.constant 0 : index
    %c0_7 = arith.constant 0 : index
    %c0_8 = arith.constant 0 : index
    %7 = vector.load %arg6[%c0_6, %c0_7, %c0_8] : memref<1x8x2xf32, #tpu.memory_space<vmem>>, vector<1x8x2xf32>
    %8 = vector.shape_cast %7 : vector<1x8x2xf32> to vector<8x2xf32>
    %c2_i32 = arith.constant 2 : i32
    %9 = arith.muli %c2_i32, %arg0 : i32
    %10 = arith.index_cast %9 : i32 to index
    %11 = memref.load %arg3[%10] : memref<4xf32, #tpu.memory_space<smem>>
    %c2_i32_9 = arith.constant 2 : i32
    %12 = arith.muli %c2_i32_9, %arg0 : i32
    %c1_i32 = arith.constant 1 : i32
    %13 = arith.addi %12, %c1_i32 : i32
    %14 = arith.index_cast %13 : i32 to index
    %15 = memref.load %arg3[%14] : memref<4xf32, #tpu.memory_space<smem>>
    %16 = vector.extract_strided_slice %8 {offsets = [0, 0], sizes = [8, 1], strides = [1, 1]} : vector<8x2xf32> to vector<8x1xf32>
    %17 = vector.extract_strided_slice %4 {offsets = [0, 0], sizes = [1, 128], strides = [1, 1]} : vector<2x128xf32> to vector<1x128xf32>
    %18 = vector.broadcast %11 : f32 to vector<1x128xf32>
    %19 = arith.mulf %18, %17 : vector<1x128xf32>
    %20 = vector.broadcast %16 : vector<8x1xf32> to vector<8x128xf32>
    %21 = vector.broadcast %19 : vector<1x128xf32> to vector<8x128xf32>
    %22 = arith.subf %20, %21 : vector<8x128xf32>
    %23 = arith.mulf %22, %22 : vector<8x128xf32>
    %24 = vector.extract_strided_slice %8 {offsets = [0, 1], sizes = [8, 1], strides = [1, 1]} : vector<8x2xf32> to vector<8x1xf32>
    %25 = vector.extract_strided_slice %4 {offsets = [1, 0], sizes = [1, 128], strides = [1, 1]} : vector<2x128xf32> to vector<1x128xf32>
    %26 = vector.broadcast %15 : f32 to vector<1x128xf32>
    %27 = arith.mulf %26, %25 : vector<1x128xf32>
    %28 = vector.broadcast %24 : vector<8x1xf32> to vector<8x128xf32>
    %29 = vector.broadcast %27 : vector<1x128xf32> to vector<8x128xf32>
    %30 = arith.subf %28, %29 : vector<8x128xf32>
    %31 = arith.mulf %30, %30 : vector<8x128xf32>
    %32 = arith.addf %23, %31 : vector<8x128xf32>
    %33 = math.sqrt %32 : vector<8x128xf32>
    %cst = arith.constant dense<0x7F800000> : vector<128xf32>
    %34 = vector.multi_reduction <minimumf>, %33, %cst [0] : vector<8x128xf32> to vector<128xf32>
    %35 = vector.shape_cast %34 : vector<128xf32> to vector<1x128xf32>
    %c0_10 = arith.constant 0 : index
    %c0_11 = arith.constant 0 : index
    %36 = vector.load %arg12[%c0_10, %c0_11] : memref<1x1xf32, #tpu.memory_space<vmem>>, vector<1x1xf32>
    %37 = arith.mulf %6, %35 : vector<1x128xf32>
    %cst_12 = arith.constant dense<0.000000e+00> : vector<1xf32>
    %38 = vector.multi_reduction <add>, %37, %cst_12 [1] : vector<1x128xf32> to vector<1xf32>
    %39 = vector.shape_cast %38 : vector<1xf32> to vector<1x1xf32>
    %40 = arith.addf %36, %39 : vector<1x1xf32>
    %c0_13 = arith.constant 0 : index
    %c0_14 = arith.constant 0 : index
    %41 = vector.load %arg12[%c0_13, %c0_14] : memref<1x1xf32, #tpu.memory_space<vmem>>, vector<1x1xf32>
    tpu.vector_store %arg12[%c0_13, %c0_14], %40 {strides = array<i32>} : memref<1x1xf32, #tpu.memory_space<vmem>>, vector<1x1xf32>,
    %c0_15 = arith.constant 0 : index
    %c0_16 = arith.constant 0 : index
    %42 = vector.load %arg13[%c0_15, %c0_16] : memref<1x1xf32, #tpu.memory_space<vmem>>, vector<1x1xf32>
    %cst_17 = arith.constant dense<0.000000e+00> : vector<1xf32>
    %43 = vector.multi_reduction <add>, %6, %cst_17 [1] : vector<1x128xf32> to vector<1xf32>
    %44 = vector.shape_cast %43 : vector<1xf32> to vector<1x1xf32>
    %45 = arith.addf %42, %44 : vector<1x1xf32>
    %c0_18 = arith.constant 0 : index
    %c0_19 = arith.constant 0 : index
    %46 = vector.load %arg13[%c0_18, %c0_19] : memref<1x1xf32, #tpu.memory_space<vmem>>, vector<1x1xf32>
    tpu.vector_store %arg13[%c0_18, %c0_19], %45 {strides = array<i32>} : memref<1x1xf32, #tpu.memory_space<vmem>>, vector<1x1xf32>,
    %cst_20 = arith.constant 22.6274166 : f32
    %47 = vector.broadcast %cst_20 : f32 to vector<8x128xf32>
    %48 = arith.subf %33, %47 : vector<8x128xf32>
    %49 = vector.broadcast %6 : vector<1x128xf32> to vector<8x128xf32>
    %50 = arith.mulf %49, %48 : vector<8x128xf32>
    %cst_21 = arith.constant 22.6274166 : f32
    %51 = vector.broadcast %cst_21 : f32 to vector<8x128xf32>
    %52 = arith.addf %51, %50 : vector<8x128xf32>
    %cst_22 = arith.constant -4.000000e+00 : f32
    %53 = vector.broadcast %cst_22 : f32 to vector<8x128xf32>
    %54 = arith.mulf %53, %52 : vector<8x128xf32>
    %cst_23 = arith.constant dense<0xFF800000> : vector<8xf32>
    %55 = vector.multi_reduction <maximumf>, %54, %cst_23 [1] : vector<8x128xf32> to vector<8xf32>
    %56 = vector.shape_cast %55 : vector<8xf32> to vector<8x1xf32>
    %c0_24 = arith.constant 0 : index
    %c0_25 = arith.constant 0 : index
    %57 = vector.load %arg9[%c0_24, %c0_25] : memref<8x1xf32, #tpu.memory_space<vmem>>, vector<8x1xf32>
    %58 = arith.maximumf %57, %56 : vector<8x1xf32>
    %59 = vector.broadcast %58 : vector<8x1xf32> to vector<8x128xf32>
    %60 = arith.subf %54, %59 : vector<8x128xf32>
    %61 = math.exp %60 : vector<8x128xf32>
    %c0_26 = arith.constant 0 : index
    %c0_27 = arith.constant 0 : index
    %62 = vector.load %arg9[%c0_26, %c0_27] : memref<8x1xf32, #tpu.memory_space<vmem>>, vector<8x1xf32>
    %63 = arith.subf %62, %58 : vector<8x1xf32>
    %64 = math.exp %63 : vector<8x1xf32>
    %c0_28 = arith.constant 0 : index
    %c0_29 = arith.constant 0 : index
    %65 = vector.load %arg10[%c0_28, %c0_29] : memref<8x1xf32, #tpu.memory_space<vmem>>, vector<8x1xf32>
    %66 = arith.mulf %64, %65 : vector<8x1xf32>
    %cst_30 = arith.constant dense<0.000000e+00> : vector<8xf32>
    %67 = vector.multi_reduction <add>, %61, %cst_30 [1] : vector<8x128xf32> to vector<8xf32>
    %68 = vector.shape_cast %67 : vector<8xf32> to vector<8x1xf32>
    %69 = arith.addf %66, %68 : vector<8x1xf32>
    %c0_31 = arith.constant 0 : index
    %c0_32 = arith.constant 0 : index
    %70 = vector.load %arg10[%c0_31, %c0_32] : memref<8x1xf32, #tpu.memory_space<vmem>>, vector<8x1xf32>
    tpu.vector_store %arg10[%c0_31, %c0_32], %69 {strides = array<i32>} : memref<8x1xf32, #tpu.memory_space<vmem>>, vector<8x1xf32>,
    %c0_33 = arith.constant 0 : index
    %c0_34 = arith.constant 0 : index
    %71 = vector.load %arg11[%c0_33, %c0_34] : memref<8x1xf32, #tpu.memory_space<vmem>>, vector<8x1xf32>
    %72 = arith.mulf %64, %71 : vector<8x1xf32>
    %73 = arith.mulf %52, %61 : vector<8x128xf32>
    %cst_35 = arith.constant dense<0.000000e+00> : vector<8xf32>
    %74 = vector.multi_reduction <add>, %73, %cst_35 [1] : vector<8x128xf32> to vector<8xf32>
    %75 = vector.shape_cast %74 : vector<8xf32> to vector<8x1xf32>
    %76 = arith.addf %72, %75 : vector<8x1xf32>
    %c0_36 = arith.constant 0 : index
    %c0_37 = arith.constant 0 : index
    %77 = vector.load %arg11[%c0_36, %c0_37] : memref<8x1xf32, #tpu.memory_space<vmem>>, vector<8x1xf32>
    tpu.vector_store %arg11[%c0_36, %c0_37], %76 {strides = array<i32>} : memref<8x1xf32, #tpu.memory_space<vmem>>, vector<8x1xf32>,
    %c0_38 = arith.constant 0 : index
    %c0_39 = arith.constant 0 : index
    %78 = vector.load %arg9[%c0_38, %c0_39] : memref<8x1xf32, #tpu.memory_space<vmem>>, vector<8x1xf32>
    tpu.vector_store %arg9[%c0_38, %c0_39], %58 {strides = array<i32>} : memref<8x1xf32, #tpu.memory_space<vmem>>, vector<8x1xf32>,
    %c1_i32_40 = arith.constant 1 : i32
    %79 = arith.cmpi eq, %arg1, %c1_i32_40 : i32
    %80 = arith.extui %79 : i1 to i32
    %c0_i32_41 = arith.constant 0 : i32
    %81 = arith.cmpi ne, %80, %c0_i32_41 : i32
    scf.if %81 {
      %82 = arith.index_cast %arg0 : i32 to index
      %83 = memref.load %arg2[%82] : memref<2xi32, #tpu.memory_space<smem>>
      %c0_42 = arith.constant 0 : index
      %c0_43 = arith.constant 0 : index
      %84 = vector.load %arg11[%c0_42, %c0_43] : memref<8x1xf32, #tpu.memory_space<vmem>>, vector<8x1xf32>
      %c0_44 = arith.constant 0 : index
      %c0_45 = arith.constant 0 : index
      %85 = vector.load %arg10[%c0_44, %c0_45] : memref<8x1xf32, #tpu.memory_space<vmem>>, vector<8x1xf32>
      %86 = arith.divf %84, %85 : vector<8x1xf32>
      %87 = tpu.iota {dimensions = array<i32: 0>} : vector<8x1xi32>
      %88 = vector.broadcast %83 : i32 to vector<8x1xi32>
      %89 = arith.cmpi slt, %87, %88 : vector<8x1xi32>
      %cst_46 = arith.constant 0.000000e+00 : f32
      %90 = vector.broadcast %cst_46 : f32 to vector<8x1xf32>
      %91 = arith.select %89, %86, %90 : vector<8x1xi1>, vector<8x1xf32>
      %cst_47 = arith.constant dense<0.000000e+00> : vector<1xf32>
      %92 = vector.multi_reduction <add>, %91, %cst_47 [0] : vector<8x1xf32> to vector<1xf32>
      %93 = vector.shape_cast %92 : vector<1xf32> to vector<1x1xf32>
      %94 = arith.sitofp %83 : i32 to f32
      %95 = vector.broadcast %94 : f32 to vector<1x1xf32>
      %96 = arith.divf %93, %95 : vector<1x1xf32>
      %c0_48 = arith.constant 0 : index
      %c0_49 = arith.constant 0 : index
      %97 = vector.load %arg12[%c0_48, %c0_49] : memref<1x1xf32, #tpu.memory_space<vmem>>, vector<1x1xf32>
      %c0_50 = arith.constant 0 : index
      %c0_51 = arith.constant 0 : index
      %98 = vector.load %arg13[%c0_50, %c0_51] : memref<1x1xf32, #tpu.memory_space<vmem>>, vector<1x1xf32>
      %cst_52 = arith.constant 9.99999997E-7 : f32
      %99 = vector.broadcast %cst_52 : f32 to vector<1x1xf32>
      %100 = arith.addf %98, %99 : vector<1x1xf32>
      %101 = arith.divf %97, %100 : vector<1x1xf32>
      %102 = vector.shape_cast %101 : vector<1x1xf32> to vector<1x1x1xf32>
      %c0_53 = arith.constant 0 : index
      %c0_54 = arith.constant 0 : index
      %c0_55 = arith.constant 0 : index
      %103 = vector.load %arg7[%c0_53, %c0_54, %c0_55] : memref<1x1x1xf32, #tpu.memory_space<vmem>>, vector<1x1x1xf32>
      tpu.vector_store %arg7[%c0_53, %c0_54, %c0_55], %102 {strides = array<i32>} : memref<1x1x1xf32, #tpu.memory_space<vmem>>, vector<1x1x1xf32>,
      %104 = vector.shape_cast %96 : vector<1x1xf32> to vector<1x1x1xf32>
      %c0_56 = arith.constant 0 : index
      %c0_57 = arith.constant 0 : index
      %c0_58 = arith.constant 0 : index
      %105 = vector.load %arg8[%c0_56, %c0_57, %c0_58] : memref<1x1x1xf32, #tpu.memory_space<vmem>>, vector<1x1x1xf32>
      tpu.vector_store %arg8[%c0_56, %c0_57, %c0_58], %104 {strides = array<i32>} : memref<1x1x1xf32, #tpu.memory_space<vmem>>, vector<1x1x1xf32>,
    } else {
    }
    return
  }
  func.func @transform_0(%arg0: i32, %arg1: i32, %arg2: memref<2xi32, #tpu.memory_space<smem>>, %arg3: memref<4xf32, #tpu.memory_space<smem>>) -> (i32, i32, i32) {
    %c0_i32 = arith.constant 0 : i32
    %c0_i32_0 = arith.constant 0 : i32
    %c0_i32_1 = arith.constant 0 : i32
    return %c0_i32, %c0_i32_0, %arg1 : i32, i32, i32
  }
  func.func @transform_1(%arg0: i32, %arg1: i32, %arg2: memref<2xi32, #tpu.memory_space<smem>>, %arg3: memref<4xf32, #tpu.memory_space<smem>>) -> (i32, i32, i32) {
    %c0_i32 = arith.constant 0 : i32
    %c0_i32_0 = arith.constant 0 : i32
    return %arg0, %c0_i32, %arg1 : i32, i32, i32
  }
  func.func @transform_2(%arg0: i32, %arg1: i32, %arg2: memref<2xi32, #tpu.memory_space<smem>>, %arg3: memref<4xf32, #tpu.memory_space<smem>>) -> (i32, i32, i32) {
    %c0_i32 = arith.constant 0 : i32
    %c0_i32_0 = arith.constant 0 : i32
    %c0_i32_1 = arith.constant 0 : i32
    return %arg0, %c0_i32, %c0_i32_0 : i32, i32, i32
  }
  func.func @transform_3(%arg0: i32, %arg1: i32, %arg2: memref<2xi32, #tpu.memory_space<smem>>, %arg3: memref<4xf32, #tpu.memory_space<smem>>) -> (i32, i32, i32) {
    %c0_i32 = arith.constant 0 : i32
    %c0_i32_0 = arith.constant 0 : i32
    %c0_i32_1 = arith.constant 0 : i32
    return %arg0, %c0_i32, %c0_i32_0 : i32, i32, i32
  }
  func.func @transform_4(%arg0: i32, %arg1: i32, %arg2: memref<2xi32, #tpu.memory_space<smem>>, %arg3: memref<4xf32, #tpu.memory_space<smem>>) -> (i32, i32, i32) {
    %c0_i32 = arith.constant 0 : i32
    %c0_i32_0 = arith.constant 0 : i32
    %c0_i32_1 = arith.constant 0 : i32
    return %arg0, %c0_i32, %c0_i32_0 : i32, i32, i32
  }
}

</mosaic_0001>

<llo_original>
// kernel: tpu_custom_call.1
$region0: #{tpu_custom_call.1}
  #allocation0 [shape = 'u32[]', space=smem, size = 0x4, offset = 0x4, fixed_abs, tag = 'smem constant byte address 0x4 - core index']
  #allocation1 [shape = 'u32[144,128]{1,0:T(1,128)}', space=vmem, size = 0x12000, scoped, tag = 'internal scratch']
  #allocation2 [shape = 'f32[8,1]{1,0:T(8,128)}', space=vmem, size = 0x1000, scoped, tag = 'scratch operand']
  #allocation3 [shape = 'f32[8,1]{1,0:T(8,128)}', space=vmem, size = 0x1000, scoped, tag = 'scratch operand']
  #allocation4 [shape = 'f32[8,1]{1,0:T(8,128)}', space=vmem, size = 0x1000, scoped, tag = 'scratch operand']
  #allocation5 [shape = 'f32[1,1]{1,0:T(1,128)}', space=vmem, size = 0x200, scoped, tag = 'scratch operand']
  #allocation6 [shape = 'f32[1,1]{1,0:T(1,128)}', space=vmem, size = 0x200, scoped, tag = 'scratch operand']
  #allocation7 [shape = 's32[1]{0}', space=sflag, size = 0x4, scoped, tag = 'scoped memory for tpu_custom_call.1']
  #allocation8 [shape = 'u8[512]{0}', space=smem, size = 0x200, scoped, tag = 'prefetched SMEM operand 0']
  #allocation9 [shape = 'u8[512]{0}', space=smem, size = 0x200, scoped, tag = 'prefetched SMEM operand 1']
  %s0 = inlined_call_operand.vmem [shape: s32[2], index: 0, kind: input, shape index: {}]
  %s1 = inlined_call_operand.vmem [shape: f32[4], index: 1, kind: input, shape index: {}]
  %s2 = inlined_call_operand.vmem [shape: f32[1,2,256], index: 2, kind: input, shape index: {}]
  %s3 = inlined_call_operand.vmem [shape: f32[2,1,256], index: 3, kind: input, shape index: {}]
  %s4 = inlined_call_operand.vmem [shape: f32[2,8,2], index: 4, kind: input, shape index: {}]
  %s5 = inlined_call_operand.vmem [shape: f32[2,1,1], index: 5, kind: output, shape index: {0}]
  %s6 = inlined_call_operand.vmem [shape: f32[2,1,1], index: 6, kind: output, shape index: {1}]
  %7 = xla_tuple %s5, %s6
  %s8 = sld [smem:[#allocation0]]
  $region61: #{tpu_custom_call.1} parent=0
    _
  %s10 = ssub.s32 1, %s8
  %s11 = scalar_select 0, %s10, %s8
  %s12 = sshll.u32 %s0, 4
  %s13 = int_to_ptr.vmem [resolvable:$true] %s12
  %15 = dma.vmem_to_smem %s13, 16, [#allocation8], [#allocation7]
  %s16 = sshll.u32 %s1, 4
  %s17 = int_to_ptr.vmem [resolvable:$true] %s16
  %19 = dma.vmem_to_smem %s17, 16, [#allocation9], [#allocation7]
  %20 = dma.done [#allocation7], 32
  %21 = sfence
  loop: start=0, step=1, limit=6
  $region2: #{tpu_custom_call.1} parent=0 // loop_pre_header
    _
  $region3: #{tpu_custom_call.1} parent=0 // loop_header
    %s23 = sphi 0, %s27
    %p24 = scmp.ge.s32.totalorder %s23, 6
    %s30 = sphi 0, %s42
    %s31 = sphi 0, %s38
    %s32 = sphi 0, %s30
    %s33 = sphi 0, %s31
    %s34 = sphi 0, %s32
    %s35 = sphi 0, %s33
    %s45 = sphi 0, %s47
    %s48 = sphi 0, %s45
    %s49 = sphi 0, %s48
    %s65 = sphi 0, %s49
    %s73 = sphi 0, %s75
    %s76 = sphi 0, %s73
    %s77 = sphi 0, %s76
    %s93 = sphi 0, %s77
    %s99 = sphi 0, %s101
    %s102 = sphi 0, %s99
    %s103 = sphi 0, %s102
    %s119 = sphi 0, %s103
    %s125 = sphi 0, %s127
    %s128 = sphi 0, %s125
    %s129 = sphi 0, %s128
    %s145 = sphi 0, %s129
    %s151 = sphi 0, %s153
    %s154 = sphi 0, %s151
    %s155 = sphi 0, %s154
    %s171 = sphi 0, %s155
  $region4: #{tpu_custom_call.1} parent=0 // loop_header_branch
    %26 = sbr.rel (%p24) target = $region8
  $region5: #{tpu_custom_call.1} parent=0 // loop_body
    %s28 = ssub.s32 %s23, 1
    %s29 = ssub.s32 %s23, 2
    %s36 = sadd.s32 1, %s31
    %p37 = scmp.ge.s32.totalorder %s36, 2
    %s38 = scalar_select %p37, 0, %s36
    %s39 = sadd.s32 1, %s30
    %s40 = scalar_select %p37, %s39, %s30
    %p41 = scmp.ge.s32.totalorder %s40, 2
    %s42 = scalar_select %p41, 0, %s40
    %s43 = ssub.s32 %s31, %s38
    %p44 = scmp.eq.s32.totalorder %s43, 0
    %s46 = sadd.s32 %s45, 1
    %s47 = scalar_select %p44, %s45, %s46
    %p50 = pneg %p44
    %p51 = scmp.eq.s32.totalorder %s23, 3
    %p52 = por %p50, %p51
    %p53 = scmp.ne.s32.totalorder %s45, %s48
    %p54 = scmp.eq.s32.totalorder %s23, 0
    %p55 = por %p53, %p54
    %p56 = scmp.ne.s32.totalorder %s45, %s48
    %p57 = scmp.eq.s32.totalorder %s28, 3
    %p58 = por %p56, %p57
    %p59 = scmp.ne.s32.totalorder %s48, %s49
    %p60 = scmp.eq.s32.totalorder %s28, 0
    %p61 = por %p59, %p60
    %p62 = scmp.ne.s32.totalorder %s48, %s49
    %p63 = scmp.eq.s32.totalorder %s29, 3
    %p64 = por %p62, %p63
    %p66 = scmp.ne.s32.totalorder %s49, %s65
    %p67 = scmp.eq.s32.totalorder %s29, 0
    %p68 = por %p66, %p67
    %s69 = ssub.s32 %s30, %s42
    %s70 = ssub.s32 %s31, %s38
    %s71 = sor.u32 %s69, %s70
    %p72 = scmp.eq.s32.totalorder %s71, 0
    %s74 = sadd.s32 %s73, 1
    %s75 = scalar_select %p72, %s73, %s74
    %p78 = pneg %p72
    %p79 = scmp.eq.s32.totalorder %s23, 3
    %p80 = por %p78, %p79
    %p81 = scmp.ne.s32.totalorder %s73, %s76
    %p82 = scmp.eq.s32.totalorder %s23, 0
    %p83 = por %p81, %p82
    %p84 = scmp.ne.s32.totalorder %s73, %s76
    %p85 = scmp.eq.s32.totalorder %s28, 3
    %p86 = por %p84, %p85
    %p87 = scmp.ne.s32.totalorder %s76, %s77
    %p88 = scmp.eq.s32.totalorder %s28, 0
    %p89 = por %p87, %p88
    %p90 = scmp.ne.s32.totalorder %s76, %s77
    %p91 = scmp.eq.s32.totalorder %s29, 3
    %p92 = por %p90, %p91
    %p94 = scmp.ne.s32.totalorder %s77, %s93
    %p95 = scmp.eq.s32.totalorder %s29, 0
    %p96 = por %p94, %p95
    %s97 = ssub.s32 %s30, %s42
    %p98 = scmp.eq.s32.totalorder %s97, 0
    %s100 = sadd.s32 %s99, 1
    %s101 = scalar_select %p98, %s99, %s100
    %p104 = pneg %p98
    %p105 = scmp.eq.s32.totalorder %s23, 3
    %p106 = por %p104, %p105
    %p107 = scmp.ne.s32.totalorder %s99, %s102
    %p108 = scmp.eq.s32.totalorder %s23, 0
    %p109 = por %p107, %p108
    %p110 = scmp.ne.s32.totalorder %s99, %s102
    %p111 = scmp.eq.s32.totalorder %s28, 3
    %p112 = por %p110, %p111
    %p113 = scmp.ne.s32.totalorder %s102, %s103
    %p114 = scmp.eq.s32.totalorder %s28, 0
    %p115 = por %p113, %p114
    %p116 = scmp.ne.s32.totalorder %s102, %s103
    %p117 = scmp.eq.s32.totalorder %s29, 3
    %p118 = por %p116, %p117
    %p120 = scmp.ne.s32.totalorder %s103, %s119
    %p121 = scmp.eq.s32.totalorder %s29, 0
    %p122 = por %p120, %p121
    %s123 = ssub.s32 %s30, %s42
    %p124 = scmp.eq.s32.totalorder %s123, 0
    %s126 = sadd.s32 %s125, 1
    %s127 = scalar_select %p124, %s125, %s126
    %p130 = pneg %p124
    %p131 = scmp.eq.s32.totalorder %s23, 3
    %p132 = por %p130, %p131
    %p133 = scmp.ne.s32.totalorder %s125, %s128
    %p134 = scmp.eq.s32.totalorder %s23, 0
    %p135 = por %p133, %p134
    %p136 = scmp.ne.s32.totalorder %s125, %s128
    %p137 = scmp.eq.s32.totalorder %s28, 3
    %p138 = por %p136, %p137
    %p139 = scmp.ne.s32.totalorder %s128, %s129
    %p140 = scmp.eq.s32.totalorder %s28, 0
    %p141 = por %p139, %p140
    %p142 = scmp.ne.s32.totalorder %s128, %s129
    %p143 = scmp.eq.s32.totalorder %s29, 3
    %p144 = por %p142, %p143
    %p146 = scmp.ne.s32.totalorder %s129, %s145
    %p147 = scmp.eq.s32.totalorder %s29, 0
    %p148 = por %p146, %p147
    %s149 = ssub.s32 %s30, %s42
    %p150 = scmp.eq.s32.totalorder %s149, 0
    %s152 = sadd.s32 %s151, 1
    %s153 = scalar_select %p150, %s151, %s152
    %p156 = pneg %p150
    %p157 = scmp.eq.s32.totalorder %s23, 3
    %p158 = por %p156, %p157
    %p159 = scmp.ne.s32.totalorder %s151, %s154
    %p160 = scmp.eq.s32.totalorder %s23, 0
    %p161 = por %p159, %p160
    %p162 = scmp.ne.s32.totalorder %s151, %s154
    %p163 = scmp.eq.s32.totalorder %s28, 3
    %p164 = por %p162, %p163
    %p165 = scmp.ne.s32.totalorder %s154, %s155
    %p166 = scmp.eq.s32.totalorder %s28, 0
    %p167 = por %p165, %p166
    %p168 = scmp.ne.s32.totalorder %s154, %s155
    %p169 = scmp.eq.s32.totalorder %s29, 3
    %p170 = por %p168, %p169
    %p172 = scmp.ne.s32.totalorder %s155, %s171
    %p173 = scmp.eq.s32.totalorder %s29, 0
    %p174 = por %p172, %p173
    %p175 = scmp.le.s32.totalorder 1, %s23
    %p176 = scmp.lt.s32.totalorder %s23, 5
    %p177 = pnand %p175, %p176
    %p178 = pneg %p177
    // Predicated region
    $region9: #{tpu_custom_call.1} parent=5 // pred_check
      _
    $region10: #{tpu_custom_call.1} parent=5 // pred_check_branch
      %180 = sbr.rel (%p177) target = $region12
    $region11: #{tpu_custom_call.1} parent=5 // pred_region
      %s181 = ssub.s32 %s23, 1
    $region12: #{tpu_custom_call.1} parent=5 // pred_fallthru
      _
    %p182 = scmp.lt.s32.totalorder %s23, 4
    // Predicated region
    $region13: #{tpu_custom_call.1} parent=5 // pred_check
      %p183 = pneg %p182
    $region14: #{tpu_custom_call.1} parent=5 // pred_check_branch
      %185 = sbr.rel (%p183) target = $region16
    $region15: #{tpu_custom_call.1} parent=5 // pred_region
      // Predicated region
      $region17: #{tpu_custom_call.1} parent=15 // pred_check
        %p186 = pneg %p55
      $region18: #{tpu_custom_call.1} parent=15 // pred_check_branch
        %188 = sbr.rel (%p186) target = $region20
      $region19: #{tpu_custom_call.1} parent=15 // pred_region
        %p189 = scmp.lt.s32.totalorder %s31, 1
        %s190 = scalar_select %p189, %s31, 1
        %s191 = smul.addr %s190, 2
        %s192 = scalar_lea.vmem %s2, %s191
      $region20: #{tpu_custom_call.1} parent=15 // pred_fallthru
        _
      // Predicated region
      $region21: #{tpu_custom_call.1} parent=15 // pred_check
        %p193 = pneg %p83
      $region22: #{tpu_custom_call.1} parent=15 // pred_check_branch
        %195 = sbr.rel (%p193) target = $region24
      $region23: #{tpu_custom_call.1} parent=15 // pred_region
        %p196 = scmp.lt.s32.totalorder %s30, 1
        %s197 = scalar_select %p196, %s30, 1
        %p198 = scmp.lt.s32.totalorder %s31, 1
        %s199 = scalar_select %p198, %s31, 1
        %s200 = smul.addr %s197, 2
        %s201 = sadd.s32 %s199, %s200
        %s202 = scalar_lea.vmem %s3, %s201
      $region24: #{tpu_custom_call.1} parent=15 // pred_fallthru
        _
      // Predicated region
      $region25: #{tpu_custom_call.1} parent=15 // pred_check
        %p203 = pneg %p109
      $region26: #{tpu_custom_call.1} parent=15 // pred_check_branch
        %205 = sbr.rel (%p203) target = $region28
      $region27: #{tpu_custom_call.1} parent=15 // pred_region
        %p206 = scmp.lt.s32.totalorder %s30, 1
        %s207 = scalar_select %p206, %s30, 1
        %s208 = smul.addr %s207, 8
        %s209 = scalar_lea.vmem %s4, %s208
      $region28: #{tpu_custom_call.1} parent=15 // pred_fallthru
        _
    $region16: #{tpu_custom_call.1} parent=5 // pred_fallthru
      _
    %p210 = scmp.le.s32.totalorder 1, %s23
    %p211 = scmp.lt.s32.totalorder %s23, 5
    %p212 = pnand %p210, %p211
    %p213 = pneg %p212
    // Predicated region
    $region29: #{tpu_custom_call.1} parent=5 // pred_check
      _
    $region30: #{tpu_custom_call.1} parent=5 // pred_check_branch
      %215 = sbr.rel (%p212) target = $region32
    $region31: #{tpu_custom_call.1} parent=5 // pred_region
      %s216 = ssub.s32 %s23, 1
      %p217 = scmp.lt.s32.totalorder %s33, 1
      %s218 = scalar_select %p217, %s33, 1
      %s219 = smul.addr %s218, 2
      %s220 = scalar_lea.vmem %s2, %s219
      %p221 = pneg %p61
      %p222 = pneg %p58
      %p223 = scmp.lt.s32.totalorder %s32, 1
      %s224 = scalar_select %p223, %s32, 1
      %p225 = scmp.lt.s32.totalorder %s33, 1
      %s226 = scalar_select %p225, %s33, 1
      %s227 = smul.addr %s224, 2
      %s228 = sadd.s32 %s226, %s227
      %s229 = scalar_lea.vmem %s3, %s228
      %p230 = pneg %p89
      %p231 = pneg %p86
      %p232 = scmp.lt.s32.totalorder %s32, 1
      %s233 = scalar_select %p232, %s32, 1
      %s234 = smul.addr %s233, 8
      %s235 = scalar_lea.vmem %s4, %s234
      %p236 = pneg %p115
      %p237 = pneg %p112
      %p238 = pneg %p141
      %p239 = pneg %p138
      %p240 = scmp.lt.s32.totalorder %s32, 1
      %s241 = scalar_select %p240, %s32, 1
      %s242 = scalar_lea.vmem %s5, %s241
      %p243 = pneg %p167
      %p244 = pneg %p164
      %p245 = scmp.lt.s32.totalorder %s32, 1
      %s246 = scalar_select %p245, %s32, 1
      %s247 = scalar_lea.vmem %s6, %s246
      %p248 = scmp.lt.s32.totalorder %s33, 1
      %s249 = scalar_select %p248, %s33, 1
      %s250 = smul.addr %s249, 2
      %s251 = scalar_lea.vmem %s2, %s250
      %p252 = scmp.lt.s32.totalorder %s32, 1
      %s253 = scalar_select %p252, %s32, 1
      %p254 = scmp.lt.s32.totalorder %s33, 1
      %s255 = scalar_select %p254, %s33, 1
      %s256 = smul.addr %s253, 2
      %s257 = sadd.s32 %s255, %s256
      %s258 = scalar_lea.vmem %s3, %s257
      %p259 = scmp.lt.s32.totalorder %s32, 1
      %s260 = scalar_select %p259, %s32, 1
      %s261 = smul.addr %s260, 8
      %s262 = scalar_lea.vmem %s4, %s261
      %p263 = scmp.lt.s32.totalorder %s32, 1
      %s264 = scalar_select %p263, %s32, 1
      %s265 = scalar_lea.vmem %s5, %s264
      %p266 = scmp.lt.s32.totalorder %s32, 1
      %s267 = scalar_select %p266, %s32, 1
      %s268 = scalar_lea.vmem %s6, %s267
      %p269 = scmp.eq.s32.totalorder %s33, 0
      // Predicated region
      $region33: #{tpu_custom_call.1} parent=31 // pred_check
        %p270 = pneg %p269
      $region34: #{tpu_custom_call.1} parent=31 // pred_check_branch
        %272 = sbr.rel (%p270) target = $region36
      $region35: #{tpu_custom_call.1} parent=31 // pred_region
        %vm273 = vcmask 7168
        %274 = vst.msk [vmem:[#allocation2] sm:$0xff] %vm273, -inf
        %275 = vst.msk [vmem:[#allocation3] sm:$0xff] %vm273, 0.0
        %276 = vst.msk [vmem:[#allocation4] sm:$0xff] %vm273, 0.0
        %vm277 = vcmask 0
        %278 = vst.msk [vmem:[#allocation5] sm:$0x1] %vm277, 0.0
        %279 = vst.msk [vmem:[#allocation6] sm:$0x1] %vm277, 0.0
      $region36: #{tpu_custom_call.1} parent=31 // pred_fallthru
        _
      %v280 = vld [vmem:[%s251] sm:$0x3]
      %v281 = vld [vmem:[%s258] sm:$0x1]
      %v282 = vld [vmem:[%s262] sm:$0xff]
      %s283 = smul.u32 %s32, 2
      %s284 = sld [smem:[#allocation9 + %s283]]
      %s285 = sadd.s32 %s283, 1
      %s286 = sld [smem:[#allocation9 + %s285]]
      %v287 = vstv %s284
      %v288 = vmul.f32 %v287, %v280
      %290 = vset.pattern.permute.xlu0 0
      %291 = vperm.xlu0 %290, %v282
      %v292 = vpop.permute.xlu0 %291
      %v294 = vlaneseq
      %v295 = vshrl.u32 %v294, 7
      %v296 = vsub.s32 0, %v295
      %v297 = vrot.slane %v288, %v296
      %v298 = vsub.f32 %v292, %v297
      %v299 = vmul.f32 %v298, %v298
      %v300 = vstv %s286
      %v301 = vmul.f32 %v300, %v280
      %302 = vset.pattern.permute.xlu0 1
      %303 = vperm.xlu0 %302, %v282
      %v304 = vpop.permute.xlu0 %303
      %v306 = vlaneseq
      %v307 = vshrl.u32 %v306, 7
      %v308 = vsub.s32 1, %v307
      %v309 = vrot.slane %v301, %v308
      %v310 = vsub.f32 %v304, %v309
      %v311 = vmul.f32 %v310, %v310
      %v312 = vadd.f32 %v299, %v311
      %v313 = vrsqrt.pop %v312
      %v314 = vmul.f32 %v312, %v313
      %vm315 = vcmp.eq.f32.partialorder %v312, inf
      %v316 = vsel %vm315, %v312, %v314
      %vm317 = vcmp.eq.f32.partialorder %v312, 0.0
      %v318 = vand.u32 %v312, 2147483648
      %v319 = vsel %vm317, %v318, %v316
      %v320 = vrot.slane %v319, 4
      %v321 = vmin.f32 %v319, %v320
      %v322 = vrot.slane %v321, 2
      %v323 = vmin.f32 %v321, %v322
      %v324 = vrot.slane %v323, 1
      %v325 = vmin.f32 %v323, %v324
      %v326 = vld [vmem:[#allocation5] sm:$0x1]
      %v327 = vmul.f32 %v281, %v325
      %vm328 = vcmask 1040384
      %v329 = vsel %vm328, %v327, 0.0
      %330 = vadd.xlane.f32.xlu0 %v329
      %v331 = vpop.xlane.xlu0 %330
      %v332 = vadd.f32 %v326, %v331
      %vm333 = vcmask 0
      %334 = vst.msk [vmem:[#allocation5] sm:$0x1] %vm333, %v332
      %v335 = vld [vmem:[#allocation6] sm:$0x1]
      %v336 = vsel %vm328, %v281, 0.0
      %337 = vadd.xlane.f32.xlu0 %v336
      %v338 = vpop.xlane.xlu0 %337
      %v339 = vadd.f32 %v335, %v338
      %340 = vst.msk [vmem:[#allocation6] sm:$0x1] %vm333, %v339
      %v341 = vsub.f32 %v319, 22.627417
      %v343 = vlaneseq
      %v344 = vshrl.u32 %v343, 7
      %v345 = vsub.s32 0, %v344
      %v346 = vrot.slane %v281, %v345
      %v348 = vmul.f32 %v346, %v341
      %v349 = vadd.f32 %v348, 22.627417
      %v350 = vmul.f32 %v349, -4.0
      %351 = vmax.xlane.f32.xlu0 %v350
      %v352 = vpop.xlane.xlu0 %351
      %v353 = vld [vmem:[#allocation2] sm:$0xff]
      %v354 = vmax.f32 %v353, %v352
      %356 = vset.pattern.permute.xlu0 0
      %357 = vperm.xlu0 %356, %v354
      %v358 = vpop.permute.xlu0 %357
      %v360 = vsub.f32 %v350, %v358
      %v361 = vmul.f32 %v360, 1.442695
      %v362 = vpow.pop %v361
      %v363 = vsub.f32 %v353, %v354
      %v364 = vmul.f32 %v363, 1.442695
      %v365 = vpow.pop %v364
      %v366 = vld [vmem:[#allocation3] sm:$0xff]
      %v367 = vmul.f32 %v365, %v366
      %368 = vadd.xlane.f32.xlu0 %v362
      %v369 = vpop.xlane.xlu0 %368
      %v370 = vadd.f32 %v367, %v369
      %vm371 = vcmask 7168
      %372 = vst.msk [vmem:[#allocation3] sm:$0xff] %vm371, %v370
      %v373 = vld [vmem:[#allocation4] sm:$0xff]
      %v374 = vmul.f32 %v365, %v373
      %v375 = vmul.f32 %v349, %v362
      %376 = vadd.xlane.f32.xlu0 %v375
      %v377 = vpop.xlane.xlu0 %376
      %v378 = vadd.f32 %v374, %v377
      %379 = vst.msk [vmem:[#allocation4] sm:$0xff] %vm371, %v378
      %380 = vst.msk [vmem:[#allocation2] sm:$0xff] %vm371, %v354
      %p381 = scmp.eq.s32.totalorder %s33, 1
      // Predicated region
      $region37: #{tpu_custom_call.1} parent=31 // pred_check
        %p382 = pneg %p381
      $region38: #{tpu_custom_call.1} parent=31 // pred_check_branch
        %384 = sbr.rel (%p382) target = $region40
      $region39: #{tpu_custom_call.1} parent=31 // pred_region
        %s385 = sld [smem:[#allocation8 + %s32]]
        %v386 = vld [vmem:[#allocation4] sm:$0xff]
        %v387 = vld [vmem:[#allocation3] sm:$0xff]
        %v388 = vrcp.pop %v387
        %v389 = vmul.f32 %v386, %v388
        %v390 = vlaneseq
        %v391 = vshrl.u32 %v390, 7
        %v392 = vstv %s385
        %vm393 = vcmp.lt.s32.totalorder %v391, %v392
        %v394 = vsel %vm393, %v389, 0.0
        %v395 = vsel %vm371, %v394, 0.0
        %v396 = vrot.slane %v395, 4
        %v397 = vadd.f32 %v395, %v396
        %v398 = vrot.slane %v397, 2
        %v399 = vadd.f32 %v397, %v398
        %v400 = vrot.slane %v399, 1
        %v401 = vadd.f32 %v399, %v400
        %s402 = scvt.s32.f32 %s385
        %v403 = vstv %s402
        %v404 = vrcp.pop %v403
        %v405 = vmul.f32 %v401, %v404
        %v406 = vld [vmem:[#allocation5] sm:$0x1]
        %v407 = vld [vmem:[#allocation6] sm:$0x1]
        %v408 = vadd.f32 %v407, 1e-06
        %v409 = vrcp.pop %v408
        %v410 = vmul.f32 %v406, %v409
        %411 = vst.msk [vmem:[%s265] sm:$0x1] %vm333, %v410
        %412 = vst.msk [vmem:[%s268] sm:$0x1] %vm333, %v405
      $region40: #{tpu_custom_call.1} parent=31 // pred_fallthru
        _
      %p413 = scmp.lt.s32.totalorder %s32, 1
      %s414 = scalar_select %p413, %s32, 1
      %s415 = scalar_lea.vmem %s5, %s414
      %p416 = scmp.lt.s32.totalorder %s32, 1
      %s417 = scalar_select %p416, %s32, 1
      %s418 = scalar_lea.vmem %s6, %s417
      // Predicated region
      $region41: #{tpu_custom_call.1} parent=31 // pred_check
        %p419 = pneg %p138
      $region42: #{tpu_custom_call.1} parent=31 // pred_check_branch
        %421 = sbr.rel (%p419) target = $region44
      $region43: #{tpu_custom_call.1} parent=31 // pred_region
        _
      $region44: #{tpu_custom_call.1} parent=31 // pred_fallthru
        _
      // Predicated region
      $region45: #{tpu_custom_call.1} parent=31 // pred_check
        %p422 = pneg %p164
      $region46: #{tpu_custom_call.1} parent=31 // pred_check_branch
        %424 = sbr.rel (%p422) target = $region48
      $region47: #{tpu_custom_call.1} parent=31 // pred_region
        _
      $region48: #{tpu_custom_call.1} parent=31 // pred_fallthru
        _
    $region32: #{tpu_custom_call.1} parent=5 // pred_fallthru
      _
    %p425 = scmp.le.s32.totalorder 2, %s23
    // Predicated region
    $region49: #{tpu_custom_call.1} parent=5 // pred_check
      %p426 = pneg %p425
    $region50: #{tpu_custom_call.1} parent=5 // pred_check_branch
      %428 = sbr.rel (%p426) target = $region52
    $region51: #{tpu_custom_call.1} parent=5 // pred_region
      %s429 = ssub.s32 %s23, 2
      // Predicated region
      $region53: #{tpu_custom_call.1} parent=51 // pred_check
        %p430 = pneg %p144
      $region54: #{tpu_custom_call.1} parent=51 // pred_check_branch
        %432 = sbr.rel (%p430) target = $region56
      $region55: #{tpu_custom_call.1} parent=51 // pred_region
        %p433 = scmp.lt.s32.totalorder %s34, 1
        %s434 = scalar_select %p433, %s34, 1
        %s435 = scalar_lea.vmem %s5, %s434
      $region56: #{tpu_custom_call.1} parent=51 // pred_fallthru
        _
      // Predicated region
      $region57: #{tpu_custom_call.1} parent=51 // pred_check
        %p436 = pneg %p170
      $region58: #{tpu_custom_call.1} parent=51 // pred_check_branch
        %438 = sbr.rel (%p436) target = $region60
      $region59: #{tpu_custom_call.1} parent=51 // pred_region
        %p439 = scmp.lt.s32.totalorder %s34, 1
        %s440 = scalar_select %p439, %s34, 1
        %s441 = scalar_lea.vmem %s6, %s440
      $region60: #{tpu_custom_call.1} parent=51 // pred_fallthru
        _
    $region52: #{tpu_custom_call.1} parent=5 // pred_fallthru
      _
  $region6: #{tpu_custom_call.1} parent=0 // loop_footer
    %s27 = sadd.s32 1, %s23
  $region7: #{tpu_custom_call.1} parent=0 // loop_footer_branch
    %22 = sbr.rel target = $region3
  $region8: #{tpu_custom_call.1} parent=0 // loop_exit
    _

</llo_original>
